<compile_context>
chip_gen: v5e
topology: v5e:2x2
jax: 0.10.0
libtpu: 0.0.40
codegen_flags: <defaults>
</compile_context>

<pallas_src>
import functools

import numpy as np
import jax
import jax.numpy as jnp
from jax import lax
from jax.experimental import pallas as pl
from jax.experimental.pallas import tpu as pltpu


_SUBLANE = 8
_NSEM = 16                     # in-flight row DMAs for the HBM gather path
_EPS_SQ = 1e-24                # (1e-12)**2 -> matches F.normalize(dim=1) eps
_ONEHOT_MAX_V = 4096           # one-hot MXU gather only for "small" tables
_ONEHOT_BYTES_BUDGET = 2 << 20  # cap on the (row_block, V) one-hot temporary
_LANE = 128


def _round_up(x: int, m: int) -> int:
    return ((x + m - 1) // m) * m


_VMEM_CAP_CACHE = [None]


def _vmem_cap_bytes() -> int:
    """Per-core VMEM capacity; conservative fallback = 64 MiB (v7x)."""
    if _VMEM_CAP_CACHE[0] is None:
        cap = 0
        try:
            cap = int(pltpu.get_tpu_info().vmem_capacity_bytes)
        except Exception:
            cap = 0
        _VMEM_CAP_CACHE[0] = cap if cap > 0 else 64 * 1024 * 1024
    return _VMEM_CAP_CACHE[0]


def _padded_bytes(rows: int, cols: int, itemsize: int) -> int:
    """VMEM footprint of a (rows, cols) buffer after (8,128) tile padding."""
    return _round_up(max(rows, 1), _SUBLANE) * _round_up(max(cols, 1), _LANE) * itemsize


# ----------------------------------------------------------------------------
# Fast path (large batches, small/medium tables): table is DMA'd HBM->VMEM
# once into a persistent scratch; each grid step gathers `row_block` rows with
# a one-hot MXU matmul (exact) and normalizes the whole tile vectorized.
# ----------------------------------------------------------------------------
def _onehot_gather_norm_kernel(ids_ref, table_hbm, out_ref, tbl_vmem, tbl_sem):
    # Single-buffered table: load it exactly once (grid axis is "arbitrary",
    # so step 0 always runs first and the scratch persists across steps).
    @pl.when(pl.program_id(0) == 0)
    def _():
        cp = pltpu.make_async_copy(table_hbm, tbl_vmem, tbl_sem)
        cp.start()
        cp.wait()

    row_block = out_ref.shape[0]
    v = tbl_vmem.shape[0]

    # Vectorized gather on the MXU: onehot(ids) @ table.  Each one-hot row has
    # a single 1.0, so the result is bit-exact equal to a row gather.
    lanes = lax.broadcasted_iota(jnp.int32, (row_block, v), 1)
    onehot = (ids_ref[...] == lanes).astype(tbl_vmem.dtype)      # (rb, V)
    rows = jnp.dot(onehot, tbl_vmem[...],
                   preferred_element_type=jnp.float32)           # (rb, D) f32

    # L2 normalize (rsqrt on EUP; clamp matches F.normalize eps=1e-12).
    sq = jnp.sum(rows * rows, axis=-1, keepdims=True)
    inv = lax.rsqrt(jnp.maximum(sq, _EPS_SQ))
    out_ref[...] = (rows * inv).astype(out_ref.dtype)            # single store


@functools.partial(jax.jit, static_argnames=("row_block", "vmem_limit"))
def _embed_norm_onehot(table, ids, *, row_block, vmem_limit):
    n = ids.shape[0]
    v, d = table.shape
    # NOTE: out-of-range ids are clamped (torch.nn.Embedding would error).
    ids = jnp.clip(ids.astype(jnp.int32), 0, v - 1)

    n_pad = _round_up(max(n, 1), row_block)
    ids_pad = jnp.zeros((n_pad, 1), jnp.int32).at[:n, 0].set(ids)

    grid = (n_pad // row_block,)
    out = pl.pallas_call(
        _onehot_gather_norm_kernel,
        out_shape=jax.ShapeDtypeStruct((n_pad, d), table.dtype),
        grid_spec=pltpu.PrefetchScalarGridSpec(
            num_scalar_prefetch=0,
            grid=grid,
            in_specs=[
                pl.BlockSpec((row_block, 1), lambda c: (c, 0)),  # ids (VMEM)
                pl.BlockSpec(memory_space=pl.ANY),               # table in HBM
            ],
            out_specs=pl.BlockSpec((row_block, d), lambda c: (c, 0)),
            scratch_shapes=[
                pltpu.VMEM((v, d), table.dtype),   # single-buffered table
                pltpu.SemaphoreType.DMA(()),
            ],
        ),
        compiler_params=pltpu.CompilerParams(
            # "arbitrary": the persistent table scratch requires sequential
            # execution, and it avoids a duplicate full-table DMA per core on
            # v7x's dual TensorCore for small grids.
            dimension_semantics=("arbitrary",),
            vmem_limit_bytes=vmem_limit),
    )(ids_pad, table)
    return out[:n]


# ----------------------------------------------------------------------------
# Fallback path (tiny batches and/or huge tables): the table stays in HBM
# (memory_space=pl.ANY); each grid step gathers `row_block` rows with a
# rolling window of _NSEM async row DMAs into a dense 2-D VMEM staging buffer
# and then normalizes the whole block in one vectorized pass.
# The DMA issue/wait loops are statically unrolled so that every VMEM
# destination offset is a static slice; only the HBM source row index (read
# from the SMEM-prefetched ids) is dynamic.
# ----------------------------------------------------------------------------
def _dma_gather_norm_kernel(ids_ref, table_hbm, out_ref, rows_ref, sems):
    row_block = rows_ref.shape[0]
    base = pl.program_id(0) * row_block

    def start_row(r, idx):                       # r: static int, idx: SMEM scalar
        pltpu.make_async_copy(
            table_hbm.at[pl.ds(idx, 1), :],      # (1, D) row in HBM (dynamic)
            rows_ref.at[r:r + 1, :],             # (1, D) slot (static offset)
            sems.at[r % _NSEM]).start()

    def wait_row(r):
        pltpu.make_async_copy(
            table_hbm.at[pl.ds(0, 1), :],
            rows_ref.at[r:r + 1, :],
            sems.at[r % _NSEM]).wait()

    # Prime a window of _NSEM in-flight row DMAs.
    for r in range(min(_NSEM, row_block)):
        start_row(r, ids_ref[base + r])

    # Steady state: read the NEXT id from SMEM before the wait (a DMA wait
    # breaks SMEM sst->sld forwarding), wait row r, then refill the window.
    for r in range(row_block):
        nxt = r + _NSEM
        if nxt < row_block:
            nxt_idx = ids_ref[base + nxt]        # hoisted above the wait
        wait_row(r)
        if nxt < row_block:
            start_row(nxt, nxt_idx)

    # One dense vectorized normalize + a single store of the whole block.
    rows = rows_ref[...].astype(jnp.float32)     # (row_block, D)
    sq = jnp.sum(rows * rows, axis=-1, keepdims=True)
    inv = lax.rsqrt(jnp.maximum(sq, _EPS_SQ))
    out_ref[...] = (rows * inv).astype(out_ref.dtype)


@functools.partial(jax.jit, static_argnames=("row_block",))
def _embed_norm_hbm(table, ids, *, row_block):
    n = ids.shape[0]
    v, d = table.shape
    ids = jnp.clip(ids.astype(jnp.int32), 0, v - 1)

    row_block = max(_NSEM, min(int(row_block), _round_up(max(n, 1), _NSEM)))
    n_pad = _round_up(max(n, 1), row_block)
    ids_pad = jnp.zeros((n_pad,), jnp.int32).at[:n].set(ids)

    grid = (n_pad // row_block,)
    out = pl.pallas_call(
        _dma_gather_norm_kernel,
        out_shape=jax.ShapeDtypeStruct((n_pad, d), table.dtype),
        grid_spec=pltpu.PrefetchScalarGridSpec(
            num_scalar_prefetch=1,                       # ids -> SMEM
            grid=grid,
            in_specs=[pl.BlockSpec(memory_space=pl.ANY)],  # table stays in HBM
            out_specs=pl.BlockSpec((row_block, d),
                                   lambda c, ids_ref: (c, 0)),
            scratch_shapes=[
                pltpu.VMEM((row_block, d), table.dtype),   # dense 2-D staging
                pltpu.SemaphoreType.DMA((_NSEM,)),
            ],
        ),
        compiler_params=pltpu.CompilerParams(
            dimension_semantics=(("parallel",) if grid[0] > 1
                                 else ("arbitrary",))),
    )(ids_pad, table)
    return out[:n]


# ----------------------------------------------------------------------------
# Path selection: batch-aware AND table-size aware.
# ----------------------------------------------------------------------------
def embed_and_normalize(table: jax.Array, ids) -> jax.Array:
    """Gather rows `ids` from `table` (V, D) and L2-normalize along D."""
    ids = jnp.asarray(ids)
    v, d = table.shape
    n = max(int(ids.shape[0]), 1)
    itemsize = jnp.dtype(table.dtype).itemsize
    table_bytes = v * d * itemsize
    gather_bytes = n * d * itemsize
    cap = _vmem_cap_bytes()

    # Fast-path row block: large (amortizes per-step overhead) but bounded by
    # the one-hot temporary budget and by the (padded) batch size.
    rb_onehot = max(_SUBLANE,
                    (_ONEHOT_BYTES_BUDGET // max(v * itemsize, 1))
                    // _SUBLANE * _SUBLANE)
    row_block = int(min(1024, _round_up(n, _SUBLANE), rb_onehot))

    fast_need = (
        _padded_bytes(v, d, itemsize)                  # resident table (1 copy)
        + 2 * _padded_bytes(row_block, d, itemsize)    # double-buffered output
        + 2 * _padded_bytes(row_block, 1, 4)           # double-buffered ids
        + 2 * _padded_bytes(row_block, v, 4)           # one-hot / rows temps
        + (4 << 20))                                   # compiler headroom
    # Only bring the whole table into VMEM if this batch actually reads a
    # meaningful fraction of it; otherwise per-row HBM gather is far cheaper.
    batch_big_enough = gather_bytes * 16 >= table_bytes

    if v <= _ONEHOT_MAX_V and batch_big_enough and fast_need <= 0.45 * cap:
        vmem_limit = int(min(0.9 * cap, max(fast_need + (8 << 20), 32 << 20)))
        return _embed_norm_onehot(table, ids, row_block=row_block,
                                  vmem_limit=vmem_limit)
    return _embed_norm_hbm(table, ids, row_block=128)


# ----------------------------------------------------------------------------
# Host-side glue replicating the module's python/numpy pieces.
# ----------------------------------------------------------------------------
def fixed_unigram_candidate_sampler(num_sampled, unique, range_max, distortion,
                                    unigrams, rng):
    # TODO(synk): host-side numpy weighted sampling (as in the original); no
    # Pallas equivalent attempted for the weighted RNG.
    weights = np.asarray(unigrams, dtype=np.float64) ** distortion
    prob = weights / weights.sum()
    sampled = rng.choice(range_max, num_sampled, p=prob, replace=not unique)
    return sampled.astype(np.int32)


class EmbeddingModelPallas:
    """JAX/Pallas re-implementation of EmbeddingModel.forward."""

    def __init__(self, num_nodes_s, num_nodes_t, embedding_dim=64,
                 neg_sample_size=10, deg=None, seed=0):
        self.embedding_dim = embedding_dim
        self.neg_sample_size = neg_sample_size
        self.deg = np.asarray(deg, dtype=np.float64)
        num_embeddings = num_nodes_s + num_nodes_t
        # Deterministic init of nn.Embedding weight (torch default ~ N(0,1)).
        key = jax.random.PRNGKey(0)
        self.node_embedding = jax.random.normal(
            key, (num_embeddings, embedding_dim), dtype=jnp.float32)
        self._np_rng = np.random.default_rng(seed)
        self.last_neg_ids = None

    def forward(self, nodes, neighbor_nodes=None):
        nodes = jnp.asarray(nodes, jnp.int32)
        if neighbor_nodes is None:
            return embed_and_normalize(self.node_embedding, nodes)

        neighbor_nodes = jnp.asarray(neighbor_nodes, jnp.int32)
        neg = fixed_unigram_candidate_sampler(
            num_sampled=self.neg_sample_size, unique=False,
            range_max=len(self.deg), distortion=0.75,
            unigrams=self.deg, rng=self._np_rng)
        neg = jnp.asarray(neg, jnp.int32)
        self.last_neg_ids = neg

        # Fuse the three lookups into a single pallas_call.
        n_b, n_n, n_g = nodes.shape[0], neighbor_nodes.shape[0], neg.shape[0]
        all_ids = jnp.concatenate([nodes, neighbor_nodes, neg], axis=0)
        all_out = embed_and_normalize(self.node_embedding, all_ids)

        node_output = all_out[:n_b]
        neighbor_output = all_out[n_b:n_b + n_n]
        neg_output = all_out[n_b + n_n:n_b + n_n + n_g]
        return node_output, neighbor_output, neg_output

    # TODO(synk): run_random_walks / loss are host-side graph algorithms
    # (networkx walks, EmbeddingLossFunctions) with no Pallas equivalent.


# ----------------------------------------------------------------------------
# Reference (pure JAX) for correctness checks.
# ----------------------------------------------------------------------------
def _ref_embed_normalize(table, ids):
    rows = jnp.take(table, jnp.asarray(ids, jnp.int32), axis=0)
    norm = jnp.maximum(jnp.linalg.norm(rows, axis=1, keepdims=True), 1e-12)
    return rows / norm


if __name__ == "__main__":
    # Small synthetic "graphs": 12 source nodes + 12 target nodes.
    num_nodes_s, num_nodes_t = 12, 12
    embedding_dim = 64
    total_nodes = num_nodes_s + num_nodes_t

    # Synthetic degree distribution for the unigram negative sampler.
    deg = np.arange(1, total_nodes + 1, dtype=np.float64)

    model = EmbeddingModelPallas(num_nodes_s, num_nodes_t,
                                 embedding_dim=embedding_dim,
                                 neg_sample_size=10, deg=deg, seed=0)

    key = jax.random.PRNGKey(0)
    k1, k2, k3, k4, k5, k6 = jax.random.split(key, 6)
    batch = 8
    nodes = jax.random.randint(k1, (batch,), 0, total_nodes, dtype=jnp.int32)
    neighbor_nodes = jax.random.randint(k2, (batch,), 0, total_nodes,
                                        dtype=jnp.int32)

    # Fused 3-lookup forward (takes the one-hot MXU fast path).
    node_out, neigh_out, neg_out = model.forward(nodes, neighbor_nodes)
    jax.block_until_ready((node_out, neigh_out, neg_out))

    ref_node = _ref_embed_normalize(model.node_embedding, nodes)
    ref_neigh = _ref_embed_normalize(model.node_embedding, neighbor_nodes)
    ref_neg = _ref_embed_normalize(model.node_embedding, model.last_neg_ids)
    np.testing.assert_allclose(np.asarray(node_out), np.asarray(ref_node),
                               rtol=1e-5, atol=1e-6)
    np.testing.assert_allclose(np.asarray(neigh_out), np.asarray(ref_neigh),
                               rtol=1e-5, atol=1e-6)
    np.testing.assert_allclose(np.asarray(neg_out), np.asarray(ref_neg),
                               rtol=1e-5, atol=1e-6)

    # Exercise the HBM manual-DMA gather path directly (multi-step grid).
    big_v = 1024
    big_table = jax.random.normal(k3, (big_v, embedding_dim), dtype=jnp.float32)
    big_ids = jax.random.randint(k4, (300,), 0, big_v, dtype=jnp.int32)
    big_out = _embed_norm_hbm(big_table, big_ids, row_block=128)
    jax.block_until_ready(big_out)
    np.testing.assert_allclose(np.asarray(big_out),
                               np.asarray(_ref_embed_normalize(big_table, big_ids)),
                               rtol=1e-5, atol=1e-6)

    # Batch-aware gating: a tiny batch against a large table must route to the
    # per-row HBM gather (no full-table DMA) through embed_and_normalize.
    huge_v = 8192
    huge_table = jax.random.normal(k5, (huge_v, embedding_dim),
                                   dtype=jnp.float32)
    tiny_ids = jax.random.randint(k6, (16,), 0, huge_v, dtype=jnp.int32)
    tiny_out = embed_and_normalize(huge_table, tiny_ids)
    jax.block_until_ready(tiny_out)
    np.testing.assert_allclose(np.asarray(tiny_out),
                               np.asarray(_ref_embed_normalize(huge_table, tiny_ids)),
                               rtol=1e-5, atol=1e-6)

    print("KERNEL_OK")
</pallas_src>

<mosaic_0001>
module attributes {stable_mosaic.version = 11 : i64} {
  func.func @_onehot_gather_norm_kernel(%arg0: i32, %arg1: memref<32x1xi32, #tpu.memory_space<vmem>>, %arg2: memref<24x64xf32, #tpu.memory_space<any>>, %arg3: memref<32x64xf32, #tpu.memory_space<vmem>>, %arg4: memref<24x64xf32, #tpu.memory_space<vmem>>, %arg5: memref<!tpu.dma_semaphore, #tpu.memory_space<semaphore_mem>>) attributes {dimension_semantics = [#tpu.dimension_semantics<arbitrary>], iteration_bounds = array<i64: 1>, scalar_prefetch = 0 : i64, scratch_operands = 2 : i64, tpu.core_type = #tpu.core_type<tc>, window_params = [{transform_indices = @transform_0, window_bounds = array<i64: 32, 1>}, {}, {transform_indices = @transform_2, window_bounds = array<i64: 32, 64>}]} {
    %c0_i32 = arith.constant 0 : i32
    %0 = arith.cmpi eq, %arg0, %c0_i32 : i32
    %1 = arith.extui %0 : i1 to i32
    %c0_i32_0 = arith.constant 0 : i32
    %2 = arith.cmpi ne, %1, %c0_i32_0 : i32
    scf.if %2 {
      tpu.enqueue_dma source(%arg2 : memref<24x64xf32, #tpu.memory_space<any>>) target(%arg4 : memref<24x64xf32, #tpu.memory_space<vmem>>) target_semaphore(%arg5 : memref<!tpu.dma_semaphore, #tpu.memory_space<semaphore_mem>>)
      tpu.wait_dma2 semaphore(%arg5 : memref<!tpu.dma_semaphore, #tpu.memory_space<semaphore_mem>>) src(%arg2 : memref<24x64xf32, #tpu.memory_space<any>>) dst(%arg4 : memref<24x64xf32, #tpu.memory_space<vmem>>)
    } else {
    }
    %3 = tpu.iota {dimensions = array<i32: 1>} : vector<32x24xi32>
    %c0 = arith.constant 0 : index
    %c0_1 = arith.constant 0 : index
    %4 = vector.load %arg1[%c0, %c0_1] : memref<32x1xi32, #tpu.memory_space<vmem>>, vector<32x1xi32>
    %5 = vector.broadcast %4 : vector<32x1xi32> to vector<32x24xi32>
    %6 = arith.cmpi eq, %5, %3 : vector<32x24xi32>
    %7 = arith.extui %6 : vector<32x24xi1> to vector<32x24xi32>
    %8 = arith.sitofp %7 : vector<32x24xi32> to vector<32x24xf32>
    %c0_2 = arith.constant 0 : index
    %c0_3 = arith.constant 0 : index
    %9 = vector.load %arg4[%c0_2, %c0_3] : memref<24x64xf32, #tpu.memory_space<vmem>>, vector<24x64xf32>
    %cst = arith.constant dense<0.000000e+00> : vector<32x64xf32>
    %10 = tpu.matmul %8, %9, %cst {dimension_numbers = #tpu.dot_dimension_numbers<[1], [0], [0], [1], [0, 0, 1, 1], [], []>} : vector<32x24xf32>, vector<24x64xf32>, vector<32x64xf32> -> vector<32x64xf32>
    %11 = arith.mulf %10, %10 : vector<32x64xf32>
    %cst_4 = arith.constant dense<0.000000e+00> : vector<32xf32>
    %12 = vector.multi_reduction <add>, %11, %cst_4 [1] : vector<32x64xf32> to vector<32xf32>
    %13 = vector.shape_cast %12 : vector<32xf32> to vector<32x1xf32>
    %cst_5 = arith.constant 1.000000e-24 : f32
    %14 = vector.broadcast %cst_5 : f32 to vector<32x1xf32>
    %15 = arith.maximumf %13, %14 : vector<32x1xf32>
    %16 = math.rsqrt %15 : vector<32x1xf32>
    %17 = vector.broadcast %16 : vector<32x1xf32> to vector<32x64xf32>
    %18 = arith.mulf %10, %17 : vector<32x64xf32>
    %c0_6 = arith.constant 0 : index
    %c0_7 = arith.constant 0 : index
    %19 = vector.load %arg3[%c0_6, %c0_7] : memref<32x64xf32, #tpu.memory_space<vmem>>, vector<32x64xf32>
    tpu.vector_store %arg3[%c0_6, %c0_7], %18 {strides = array<i32>} : memref<32x64xf32, #tpu.memory_space<vmem>>, vector<32x64xf32>,
    return
  }
  func.func @transform_0(%arg0: i32) -> (i32, i32) {
    %c0_i32 = arith.constant 0 : i32
    %c0_i32_0 = arith.constant 0 : i32
    return %arg0, %c0_i32 : i32, i32
  }
  func.func @transform_2(%arg0: i32) -> (i32, i32) {
    %c0_i32 = arith.constant 0 : i32
    %c0_i32_0 = arith.constant 0 : i32
    return %arg0, %c0_i32 : i32, i32
  }
}

</mosaic_0001>

<llo_original>
// kernel: _embed_norm_onehot.1
$region0: #{_embed_norm_onehot.1}
  #allocation0 [shape = 'u32[]', space=smem, size = 0x4, offset = 0x4, fixed_abs, tag = 'smem constant byte address 0x4 - core index']
  #allocation1 [shape = 'u32[72,128]{1,0:T(1,128)}', space=vmem, size = 0x9000, scoped, tag = 'internal scratch']
  #allocation2 [shape = 'f32[24,64]{1,0:T(8,128)}', space=vmem, size = 0x3000, scoped, tag = 'scratch operand']
  #allocation3 [shape = 's32[1]{0}', space=sflag, size = 0x4, scoped, tag = 'scratch operand']
  #allocation6 [shape = 's32[]', space=sflag, size = 0x4, offset = 0, fixed_abs, tag = 'sflag constant byte address 0x0 - dummy sync flag']
  %s0 = inlined_call_operand.vmem [shape: s32[32,1], index: 0, kind: input, shape index: {}]
  %s1 = inlined_call_operand.vmem [shape: f32[24,64], index: 1, kind: input, shape index: {}]
  %s2 = inlined_call_operand.hbm [shape: f32[32,64], index: 2, kind: output, shape index: {}]
  %s3 = sld [smem:[#allocation0]]
  $region37: #{_embed_norm_onehot.1} parent=0
    _
  %s5 = ssub.s32 1, %s3
  %s6 = scalar_select 0, %s5, %s3
  $region1: #{_embed_norm_onehot.1} parent=0
    #allocation4 [shape = 'u8[16384]{0}', space=vmem, size = 0x4000, scoped, tag = 'output window, operand 0, single buffered']
    #allocation5 [shape = 's32[1]{0}', space=sflag, size = 0x4, scoped, tag = 'scoped memory for _embed_norm_onehot.1']
    %7 = vsyncpa [#allocation5], 0
    // Predicated region
    $region2: #{_embed_norm_onehot.1} parent=1 // pred_check
      _
    $region3: #{_embed_norm_onehot.1} parent=1 // pred_check_branch
      %9 = sbr.rel (0) target = $region5
    $region4: #{_embed_norm_onehot.1} parent=1 // pred_region
      _
    $region5: #{_embed_norm_onehot.1} parent=1 // pred_fallthru
      _
    %p10 = scmp.eq.s32.totalorder 0, 0
    // Predicated region
    $region6: #{_embed_norm_onehot.1} parent=1 // pred_check
      %p11 = pneg %p10
    $region7: #{_embed_norm_onehot.1} parent=1 // pred_check_branch
      %13 = sbr.rel (%p11) target = $region9
    $region8: #{_embed_norm_onehot.1} parent=1 // pred_region
      // Predicated region
      $region10: #{_embed_norm_onehot.1} parent=8 // pred_check
        _
      $region11: #{_embed_norm_onehot.1} parent=8 // pred_check_branch
        %15 = sbr.rel (0) target = $region13
      $region12: #{_embed_norm_onehot.1} parent=8 // pred_region
        loop: start=0, step=1, limit=1
        $region14: #{_embed_norm_onehot.1} parent=12 // loop_pre_header
          _
        $region15: #{_embed_norm_onehot.1} parent=12 // loop_header
          %s17 = sphi 0, %s21
          %p18 = scmp.ge.s32.totalorder %s17, 1
          %s22 = sphi %s1, %s1
          %s23 = sphi [#allocation2], [#allocation2]
        $region16: #{_embed_norm_onehot.1} parent=12 // loop_header_branch
          %20 = sbr.rel (%p18) target = $region20
        $region17: #{_embed_norm_onehot.1} parent=12 // loop_body
          %v24 = vld [vmem:[%s22] sm:$0xff]
          %25 = vst [vmem:[%s23] sm:$0xff] %v24
          %v26 = vld [vmem:[%s22 + $0x8] sm:$0xff]
          %27 = vst [vmem:[%s23 + $0x8] sm:$0xff] %v26
          %v28 = vld [vmem:[%s22 + $0x10] sm:$0xff]
          %29 = vst [vmem:[%s23 + $0x10] sm:$0xff] %v28
        $region18: #{_embed_norm_onehot.1} parent=12 // loop_footer
          %s21 = sadd.s32 1, %s17
        $region19: #{_embed_norm_onehot.1} parent=12 // loop_footer_branch
          %16 = sbr.rel target = $region15
        $region20: #{_embed_norm_onehot.1} parent=12 // loop_exit
          _
      $region13: #{_embed_norm_onehot.1} parent=8 // pred_fallthru
        _
      // Predicated region
      $region21: #{_embed_norm_onehot.1} parent=8 // pred_check
        _
      $region22: #{_embed_norm_onehot.1} parent=8 // pred_check_branch
        %31 = sbr.rel target = $region24
      $region23: #{_embed_norm_onehot.1} parent=8 // pred_region
        _
      $region24: #{_embed_norm_onehot.1} parent=8 // pred_fallthru
        _
      // Predicated region
      $region25: #{_embed_norm_onehot.1} parent=8 // pred_check
        _
      $region26: #{_embed_norm_onehot.1} parent=8 // pred_check_branch
        %34 = sbr.rel (0) target = $region28
      $region27: #{_embed_norm_onehot.1} parent=8 // pred_region
        %35 = vsyncadd [#allocation3], 384
      $region28: #{_embed_norm_onehot.1} parent=8 // pred_fallthru
        _
      %s36 = smul.u32 24, 1
      %s37 = sshll.u32 %s36, 4
      %38 = dma.done [#allocation3], %s37
    $region9: #{_embed_norm_onehot.1} parent=1 // pred_fallthru
      _
    %v39 = vlaneseq
    %v40 = vand.u32 %v39, 127
    %v41 = vld [vmem:[%s0] sm:$0xff]
    %v42 = vld [vmem:[%s0 + $0x8] sm:$0xff]
    %v43 = vld [vmem:[%s0 + $0x10] sm:$0xff]
    %v44 = vld [vmem:[%s0 + $0x18] sm:$0xff]
    %45 = vset.pattern.permute.xlu0 0
    %46 = vperm.xlu0 %45, %v41
    %v47 = vpop.permute.xlu0 %46
    %48 = vset.pattern.permute.xlu0 0
    %49 = vperm.xlu0 %48, %v42
    %v50 = vpop.permute.xlu0 %49
    %51 = vset.pattern.permute.xlu0 0
    %52 = vperm.xlu0 %51, %v43
    %v53 = vpop.permute.xlu0 %52
    %54 = vset.pattern.permute.xlu0 0
    %55 = vperm.xlu0 %54, %v44
    %v56 = vpop.permute.xlu0 %55
    %vm57 = vcmp.eq.s32.totalorder %v47, %v40
    %vm58 = vcmp.eq.s32.totalorder %v50, %v40
    %vm59 = vcmp.eq.s32.totalorder %v53, %v40
    %vm60 = vcmp.eq.s32.totalorder %v56, %v40
    %v61 = vsel %vm57, 1, 0
    %v62 = vsel %vm58, 1, 0
    %v63 = vsel %vm59, 1, 0
    %v64 = vsel %vm60, 1, 0
    %v65 = vcvt.s32.f32 %v61
    %v66 = vcvt.s32.f32 %v62
    %v67 = vcvt.s32.f32 %v63
    %v68 = vcvt.s32.f32 %v64
    %v69 = vld [vmem:[#allocation2] sm:$0xff]
    %v70 = vld [vmem:[#allocation2 + $0x8] sm:$0xff]
    %v71 = vld [vmem:[#allocation2 + $0x10] sm:$0xff]
    %vm72 = vcmask 195584
    %v74 = vsel %vm72, %v65, 0
    %v77 = vsel %vm72, %v66, 0
    %v80 = vsel %vm72, %v67, 0
    %v83 = vsel %vm72, %v68, 0
    %85 = vmatpush.msra.mxu0 0.0
    %86 = vmatpush.msra.mxu0 0.0
    %87 = vmatpush.msra.mxu0 0.0
    %88 = vmatpush.msra.mxu0 0.0
    %89 = vmatpush.msra.mxu0 0.0
    %90 = vmatpush.msra.mxu0 0.0
    %91 = vmatpush.msra.mxu0 0.0
    %92 = vmatpush.msra.mxu0 0.0
    %93 = vmatpush.msra.mxu0 0.0
    %94 = vmatpush.msra.mxu0 0.0
    %95 = vmatpush.msra.mxu0 0.0
    %96 = vmatpush.msra.mxu0 0.0
    %97 = vmatpush.msra.mxu0 0.0
    %98 = vmatpush.msra.mxu0 %v71
    %99 = vmatpush.msra.mxu0 %v70
    %100 = vmatpush.msra.mxu0 %v69
    %101 = vmatmul.f32.gmra.mxu0 %v74
    %v102 = vpop.f32.mrf.mxu0
    %v103 = vadd.f32 0.0, %v102
    %104 = vmatmul.f32.gmra.mxu0 %v77
    %v105 = vpop.f32.mrf.mxu0
    %v106 = vadd.f32 0.0, %v105
    %107 = vmatmul.f32.gmra.mxu0 %v80
    %v108 = vpop.f32.mrf.mxu0
    %v109 = vadd.f32 0.0, %v108
    %110 = vmatmul.f32.gmra.mxu0 %v83
    %v111 = vpop.f32.mrf.mxu0
    %v112 = vadd.f32 0.0, %v111
    %113 = vdwg.mxu0
    %v114 = vmul.f32 %v103, %v103
    %v115 = vmul.f32 %v106, %v106
    %v116 = vmul.f32 %v109, %v109
    %v117 = vmul.f32 %v112, %v112
    %vm118 = vcmask 523264
    %v119 = vsel %vm118, %v114, 0.0
    %120 = vadd.xlane.f32.xlu0 %v119
    %v121 = vpop.xlane.xlu0 %120
    %v122 = vsel %vm118, %v115, 0.0
    %123 = vadd.xlane.f32.xlu0 %v122
    %v124 = vpop.xlane.xlu0 %123
    %v125 = vsel %vm118, %v116, 0.0
    %126 = vadd.xlane.f32.xlu0 %v125
    %v127 = vpop.xlane.xlu0 %126
    %v128 = vsel %vm118, %v117, 0.0
    %129 = vadd.xlane.f32.xlu0 %v128
    %v130 = vpop.xlane.xlu0 %129
    %v131 = vmax.f32 %v121, 1e-24
    %v132 = vmax.f32 %v124, 1e-24
    %v133 = vmax.f32 %v127, 1e-24
    %v134 = vmax.f32 %v130, 1e-24
    %v135 = vrsqrt.pop %v131
    %v136 = vmul.f32 %v135, %v131
    %v137 = vmul.f32 %v136, %v135
    %v138 = vmul.f32 0.5, %v137
    %v139 = vsub.f32 1.5, %v138
    %v140 = vmul.f32 %v135, %v139
    %vm141 = vweird.f32 %v131
    %vm142 = vweird.f32 %v135
    %vm143 = vmor %vm141, %vm142
    %v144 = vsel %vm143, %v135, %v140
    %v145 = vrsqrt.pop %v132
    %v146 = vmul.f32 %v145, %v132
    %v147 = vmul.f32 %v146, %v145
    %v148 = vmul.f32 0.5, %v147
    %v149 = vsub.f32 1.5, %v148
    %v150 = vmul.f32 %v145, %v149
    %vm151 = vweird.f32 %v132
    %vm152 = vweird.f32 %v145
    %vm153 = vmor %vm151, %vm152
    %v154 = vsel %vm153, %v145, %v150
    %v155 = vrsqrt.pop %v133
    %v156 = vmul.f32 %v155, %v133
    %v157 = vmul.f32 %v156, %v155
    %v158 = vmul.f32 0.5, %v157
    %v159 = vsub.f32 1.5, %v158
    %v160 = vmul.f32 %v155, %v159
    %vm161 = vweird.f32 %v133
    %vm162 = vweird.f32 %v155
    %vm163 = vmor %vm161, %vm162
    %v164 = vsel %vm163, %v155, %v160
    %v165 = vrsqrt.pop %v134
    %v166 = vmul.f32 %v165, %v134
    %v167 = vmul.f32 %v166, %v165
    %v168 = vmul.f32 0.5, %v167
    %v169 = vsub.f32 1.5, %v168
    %v170 = vmul.f32 %v165, %v169
    %vm171 = vweird.f32 %v134
    %vm172 = vweird.f32 %v165
    %vm173 = vmor %vm171, %vm172
    %v174 = vsel %vm173, %v165, %v170
    %v175 = vmul.f32 %v103, %v144
    %v176 = vmul.f32 %v106, %v154
    %v177 = vmul.f32 %v109, %v164
    %v178 = vmul.f32 %v112, %v174
    %179 = vst.msk [vmem:[#allocation4] sm:$0xff] %vm118, %v175
    %180 = vst.msk [vmem:[#allocation4 + $0x8] sm:$0xff] %vm118, %v176
    %181 = vst.msk [vmem:[#allocation4 + $0x10] sm:$0xff] %vm118, %v177
    %182 = vst.msk [vmem:[#allocation4 + $0x18] sm:$0xff] %vm118, %v178
    // Predicated region
    $region29: #{_embed_norm_onehot.1} parent=1 // pred_check
      _
    $region30: #{_embed_norm_onehot.1} parent=1 // pred_check_branch
      %184 = sbr.rel (0) target = $region32
    $region31: #{_embed_norm_onehot.1} parent=1 // pred_region
      %186 = vsyncadd [#allocation5], 0
      %s187 = sshll.u32 [#allocation4], 4
      %s188 = int_to_ptr.vmem [resolvable:$true] %s187
      %s189 = sshll.u32 %s2, 4
      %s190 = int_to_ptr.hbm [resolvable:$true] %s189
      %195 = dma.vmem_to_hbm [thread:$0]  %s188, 512, %s190, [#allocation5], 128, 128, 8
    $region32: #{_embed_norm_onehot.1} parent=1 // pred_fallthru
      _
    // Predicated region
    $region33: #{_embed_norm_onehot.1} parent=1 // pred_check
      _
    $region34: #{_embed_norm_onehot.1} parent=1 // pred_check_branch
      %197 = sbr.rel (0) target = $region36
    $region35: #{_embed_norm_onehot.1} parent=1 // pred_region
      %199 = dma.done [#allocation5], 512
    $region36: #{_embed_norm_onehot.1} parent=1 // pred_fallthru
      _
    %200 = vsyncpa [#allocation5], 1
  %201 = vsyncmov [#allocation3]
  %s202 = vpop.sfrf %201
  %p203 = scmp.eq.s32.totalorder %s202, 0
  %p204 = pneg %p203
  %206 = shalt.err (%p204)

</llo_original>
